<compile_context>
chip_gen: v5e
topology: v5e:2x2
jax: 0.10.0
libtpu: 0.0.40
codegen_flags: <defaults>
</compile_context>

<pallas_src>
import jax
import jax.numpy as jnp
import numpy as np
from jax.experimental import pallas as pl
from jax.experimental.pallas import tpu as pltpu


def _round_up(x, m):
    return (x + m - 1) // m * m


def _pick_batch_tile(B, N, C, H, n_tables, block_batch, in_itemsize,
                     cdt_itemsize, vmem_limit_bytes):
    """Pick TB = batch rows per grid step (alignment- and VMEM-aware)."""
    if B <= 8:
        return B  # one full-extent block: always layout-legal for tiny batches
    # Per-sequence-row VMEM cost inside one grid step (everything lane-pads to
    # 128): input tile (double-buffered) + hidden/ReLU f32 temporaries +
    # combined one-hot temporary.
    per_row = (2 * _round_up(C, 128) * in_itemsize
               + 2 * _round_up(H, 128) * 4
               + _round_up(n_tables, 128) * cdt_itemsize)
    budget = vmem_limit_bytes // 2              # headroom for weights / output
    tb_cap = max(8, (budget // (per_row * N)) // 8 * 8)
    tb = max(8, min(block_batch, B) // 8 * 8)   # sublane-aligned output blocks
    tb = min(tb, tb_cap)
    # Keep >= 2 grid steps (when the batch allows) so both v7x TensorCores work.
    tb = min(tb, max(8, _round_up(pl.cdiv(B, 2), 8)))
    return tb


def search_activity_encoder_forward(emb, params, embed_dim, *,
                                    block_batch=1024,
                                    compute_dtype=jnp.float32,
                                    input_dtype=None,
                                    vmem_limit_bytes=48 * 1024 * 1024):
    """emb: [B, N, text_dim + 1 + 1 + num_numeric] -> [B, out_dim].

    block_batch: batch rows per grid step.  ~1024 works for v6e/v7x; on
      v5e/v6e (128 MiB VMEM) you can raise it to 2048 with
      vmem_limit_bytes=64<<20.  The actual tile is clamped by alignment and a
      VMEM budget.
    compute_dtype: dtype the matmuls are issued in (f32 accumulation always);
      jnp.bfloat16 for native-MXU throughput on v6e/v7x.
    input_dtype: dtype the raw slab is DMA'd in.  jnp.bfloat16 halves HBM
      reads, but type/city ids must stay <= 256 to be exactly representable.
      None keeps emb.dtype.
    """
    B, N, C = emb.shape
    text_dim = 2 * embed_dim                    # matches the torch forward()

    w1 = params["w1"]
    H = w1.shape[1]
    w2 = params["w2"]
    O = w2.shape[1]
    NT = params["type_table"].shape[0]
    NC = params["city_table"].shape[0]

    # ---- fold the concat / embedding lookups into the weights (trace time) ---
    w1_text = w1[:text_dim]
    w1_type = w1[text_dim:text_dim + embed_dim]
    w1_city = w1[text_dim + embed_dim:text_dim + 2 * embed_dim]
    w1_num = w1[text_dim + 2 * embed_dim:]
    # Dense W1 aligned with the raw slab columns [text | type_id | city_id |
    # numeric]; the two id columns get zero rows (their contribution comes via
    # the projected tables).
    w_dense = jnp.concatenate(
        [w1_text, jnp.zeros((2, H), w1.dtype), w1_num], axis=0)       # [C, H]
    # Pre-project both tables and stack them so the kernel does ONE combined
    # one-hot matmul:  [oh_type | oh_city] @ [[type_tbl@W1_t], [city_tbl@W1_c]].
    tc_proj = jnp.concatenate([params["type_table"] @ w1_type,
                               params["city_table"] @ w1_city], axis=0)  # [NT+NC, H]
    b1 = params["b1"].reshape(1, H)
    # Pool-before-linear: mean over N commutes with Linear; fold 1/N into W2.
    w2s = (w2 / N).astype(w2.dtype)                                    # [H, O]
    b2 = params["b2"].reshape(1, O)

    cdt = compute_dtype
    in_dt = emb.dtype if input_dtype is None else input_dtype

    TB = _pick_batch_tile(B, N, C, H, NT + NC, block_batch,
                          jnp.dtype(in_dt).itemsize, jnp.dtype(cdt).itemsize,
                          vmem_limit_bytes)
    B_pad = _round_up(B, TB)
    if B_pad != B:
        # Padded rows are all-zero, so their ids (0) select real table rows and
        # produce garbage outputs; they are sliced off below and must never be
        # consumed directly.
        emb = jnp.pad(emb, ((0, B_pad - B), (0, 0), (0, 0)))
    x2d = emb.reshape(B_pad * N, C).astype(in_dt)   # free row-major reshape in HBM
    R = TB * N                                      # sequence rows per grid step

    def kernel(x_ref, wd_ref, tc_ref, b1_ref, w2_ref, b2_ref, o_ref):
        x = x_ref[...]                                                # [R, C]
        # Layer 1, dense part (id columns have zero weight rows).
        h = jnp.dot(x.astype(cdt), wd_ref[...].astype(cdt),
                    preferred_element_type=jnp.float32)               # [R, H] f32
        # Embedding contributions: ONE combined one-hot MXU matmul against the
        # stacked pre-projected tables.
        tid = x[:, text_dim:text_dim + 1].astype(jnp.int32)           # [R, 1]
        cid = x[:, text_dim + 1:text_dim + 2].astype(jnp.int32) + NT  # [R, 1]
        iota = jax.lax.broadcasted_iota(jnp.int32, (R, NT + NC), 1)
        oh = jnp.logical_or(iota == tid, iota == cid).astype(cdt)     # [R, NT+NC]
        h = h + jnp.dot(oh, tc_ref[...].astype(cdt),
                        preferred_element_type=jnp.float32)
        h = jnp.maximum(h + b1_ref[...], 0.0)                         # ReLU (f32)
        # Mean-pool over N BEFORE layer 2 (1/N already folded into W2).
        hp = jnp.sum(h.reshape(TB, N, H), axis=1)                     # [TB, H]
        y = jnp.dot(hp.astype(cdt), w2_ref[...].astype(cdt),
                    preferred_element_type=jnp.float32) + b2_ref[...]
        o_ref[...] = y.astype(o_ref.dtype)                            # [TB, O]

    # NOTE: the five weight/bias operands are tiny relative to the input tile,
    # so their default double-buffering costs negligible VMEM; they stay on the
    # standard pipeline (constant index_map) instead of being special-cased.
    out = pl.pallas_call(
        kernel,
        out_shape=jax.ShapeDtypeStruct((B_pad, O), jnp.float32),
        grid_spec=pltpu.PrefetchScalarGridSpec(
            num_scalar_prefetch=0,
            grid=(B_pad // TB,),
            in_specs=[
                pl.BlockSpec((R, C), lambda i: (i, 0)),         # raw slab rows
                pl.BlockSpec((C, H), lambda i: (0, 0)),         # dense W1 (id rows zeroed)
                pl.BlockSpec((NT + NC, H), lambda i: (0, 0)),   # stacked projected tables
                pl.BlockSpec((1, H), lambda i: (0, 0)),         # b1
                pl.BlockSpec((H, O), lambda i: (0, 0)),         # W2 / N
                pl.BlockSpec((1, O), lambda i: (0, 0)),         # b2
            ],
            # Natural (TB, O) output block: last dim equals the full array dim
            # (layout-legal), no 128-lane zero padding -> no 8x write
            # amplification and no extra slice pass over the lane dim.
            out_specs=pl.BlockSpec((TB, O), lambda i: (i, 0)),
        ),
        compiler_params=pltpu.CompilerParams(
            dimension_semantics=("parallel",),
            vmem_limit_bytes=vmem_limit_bytes),
    )(x2d, w_dense, tc_proj, b1, w2s, b2)

    return out if B_pad == B else out[:B]


# ---------------------------------------------------------------------------
# Pure-JAX reference (mirrors the PyTorch module) + param init.
# ---------------------------------------------------------------------------
def _reference_forward(emb, params, embed_dim):
    text_dim = 2 * embed_dim
    text_emb = emb[:, :, :text_dim]
    type_id = emb[:, :, text_dim].astype(jnp.int32)
    city_id = emb[:, :, text_dim + 1].astype(jnp.int32)
    numeric_feats = emb[:, :, text_dim + 2:]
    type_emb = jnp.take(params["type_table"], type_id, axis=0)
    city_emb = jnp.take(params["city_table"], city_id, axis=0)
    fused = jnp.concatenate([text_emb, type_emb, city_emb, numeric_feats], -1)
    h = jnp.maximum(fused @ params["w1"] + params["b1"], 0.0)
    y = h @ params["w2"] + params["b2"]
    return jnp.mean(y, axis=1)


def init_params(key, text_dim, embed_dim, num_numeric, hidden_dim, out_dim,
                num_types, num_cities):
    fusion_input_dim = text_dim + 2 * embed_dim + num_numeric
    ks = jax.random.split(key, 6)
    scale = lambda fan_in: 1.0 / np.sqrt(fan_in)
    return {
        "type_table": jax.random.normal(ks[0], (num_types, embed_dim), jnp.float32),
        "city_table": jax.random.normal(ks[1], (num_cities, embed_dim), jnp.float32),
        "w1": jax.random.uniform(ks[2], (fusion_input_dim, hidden_dim), jnp.float32,
                                 -scale(fusion_input_dim), scale(fusion_input_dim)),
        "b1": jax.random.uniform(ks[3], (hidden_dim,), jnp.float32,
                                 -scale(fusion_input_dim), scale(fusion_input_dim)),
        "w2": jax.random.uniform(ks[4], (hidden_dim, out_dim), jnp.float32,
                                 -scale(hidden_dim), scale(hidden_dim)),
        "b2": jax.random.uniform(ks[5], (out_dim,), jnp.float32,
                                 -scale(hidden_dim), scale(hidden_dim)),
    }


if __name__ == "__main__":
    # Small shapes consistent with the module (forward implies text_dim == 2*embed_dim).
    B, N = 2, 8
    embed_dim = 8
    text_dim = 2 * embed_dim          # 16
    num_numeric = 6
    hidden_dim = 32
    out_dim = 16
    num_types, num_cities = 10, 12

    key = jax.random.PRNGKey(0)
    k_params, k_text, k_type, k_city, k_num = jax.random.split(key, 5)

    params = init_params(k_params, text_dim, embed_dim, num_numeric,
                         hidden_dim, out_dim, num_types, num_cities)

    text_part = jax.random.normal(k_text, (B, N, text_dim), jnp.float32)
    type_ids = jax.random.randint(k_type, (B, N, 1), 0, num_types).astype(jnp.float32)
    city_ids = jax.random.randint(k_city, (B, N, 1), 0, num_cities).astype(jnp.float32)
    numeric = jax.random.normal(k_num, (B, N, num_numeric), jnp.float32)
    emb = jnp.concatenate([text_part, type_ids, city_ids, numeric], axis=-1)
    # emb: [B, N, text_dim + 1 + 1 + num_numeric] = [2, 8, 24]

    # On v6e/v7x you can pass input_dtype=jnp.bfloat16 / compute_dtype=jnp.bfloat16
    # (ids must stay <= 256; tolerance vs the f32 reference loosens).  The demo
    # keeps float32 end-to-end for tight validation.
    out = search_activity_encoder_forward(emb, params, embed_dim)
    out = jax.block_until_ready(out)

    ref = jax.block_until_ready(_reference_forward(emb, params, embed_dim))
    assert out.shape == (B, out_dim), out.shape
    assert np.allclose(np.asarray(out), np.asarray(ref), rtol=1e-4, atol=1e-4)

    print("KERNEL_OK")
</pallas_src>

<mosaic_0001>
module attributes {stable_mosaic.version = 11 : i64} {
  func.func @kernel(%arg0: i32, %arg1: memref<16x24xf32, #tpu.memory_space<vmem>>, %arg2: memref<24x32xf32, #tpu.memory_space<vmem>>, %arg3: memref<22x32xf32, #tpu.memory_space<vmem>>, %arg4: memref<1x32xf32, #tpu.memory_space<vmem>>, %arg5: memref<32x16xf32, #tpu.memory_space<vmem>>, %arg6: memref<1x16xf32, #tpu.memory_space<vmem>>, %arg7: memref<2x16xf32, #tpu.memory_space<vmem>>) attributes {dimension_semantics = [#tpu.dimension_semantics<parallel>], iteration_bounds = array<i64: 1>, scalar_prefetch = 0 : i64, scratch_operands = 0 : i64, tpu.core_type = #tpu.core_type<tc>, window_params = [{transform_indices = @transform_0, window_bounds = array<i64: 16, 24>}, {pipeline_mode = #tpu.pipeline_mode<synchronous>, transform_indices = @transform_1, window_bounds = array<i64: 24, 32>}, {pipeline_mode = #tpu.pipeline_mode<synchronous>, transform_indices = @transform_2, window_bounds = array<i64: 22, 32>}, {pipeline_mode = #tpu.pipeline_mode<synchronous>, transform_indices = @transform_3, window_bounds = array<i64: 1, 32>}, {pipeline_mode = #tpu.pipeline_mode<synchronous>, transform_indices = @transform_4, window_bounds = array<i64: 32, 16>}, {pipeline_mode = #tpu.pipeline_mode<synchronous>, transform_indices = @transform_5, window_bounds = array<i64: 1, 16>}, {transform_indices = @transform_6, window_bounds = array<i64: 2, 16>}]} {
    %c0 = arith.constant 0 : index
    %c0_0 = arith.constant 0 : index
    %0 = vector.load %arg1[%c0, %c0_0] : memref<16x24xf32, #tpu.memory_space<vmem>>, vector<16x24xf32>
    %c0_1 = arith.constant 0 : index
    %c0_2 = arith.constant 0 : index
    %1 = vector.load %arg2[%c0_1, %c0_2] : memref<24x32xf32, #tpu.memory_space<vmem>>, vector<24x32xf32>
    %cst = arith.constant dense<0.000000e+00> : vector<16x32xf32>
    %2 = tpu.matmul %0, %1, %cst {dimension_numbers = #tpu.dot_dimension_numbers<[1], [0], [0], [1], [0, 0, 1, 1], [], []>} : vector<16x24xf32>, vector<24x32xf32>, vector<16x32xf32> -> vector<16x32xf32>
    %3 = vector.extract_strided_slice %0 {offsets = [0, 16], sizes = [16, 1], strides = [1, 1]} : vector<16x24xf32> to vector<16x1xf32>
    %4 = arith.fptosi %3 : vector<16x1xf32> to vector<16x1xi32>
    %5 = vector.extract_strided_slice %0 {offsets = [0, 17], sizes = [16, 1], strides = [1, 1]} : vector<16x24xf32> to vector<16x1xf32>
    %6 = arith.fptosi %5 : vector<16x1xf32> to vector<16x1xi32>
    %c10_i32 = arith.constant 10 : i32
    %7 = vector.broadcast %c10_i32 : i32 to vector<16x1xi32>
    %8 = arith.addi %6, %7 : vector<16x1xi32>
    %9 = tpu.iota {dimensions = array<i32: 1>} : vector<16x22xi32>
    %10 = vector.broadcast %4 : vector<16x1xi32> to vector<16x22xi32>
    %11 = arith.cmpi eq, %9, %10 : vector<16x22xi32>
    %12 = vector.broadcast %8 : vector<16x1xi32> to vector<16x22xi32>
    %13 = arith.cmpi eq, %9, %12 : vector<16x22xi32>
    %14 = arith.ori %11, %13 : vector<16x22xi1>
    %15 = arith.extui %14 : vector<16x22xi1> to vector<16x22xi32>
    %16 = arith.sitofp %15 : vector<16x22xi32> to vector<16x22xf32>
    %c0_3 = arith.constant 0 : index
    %c0_4 = arith.constant 0 : index
    %17 = vector.load %arg3[%c0_3, %c0_4] : memref<22x32xf32, #tpu.memory_space<vmem>>, vector<22x32xf32>
    %cst_5 = arith.constant dense<0.000000e+00> : vector<16x32xf32>
    %18 = tpu.matmul %16, %17, %cst_5 {dimension_numbers = #tpu.dot_dimension_numbers<[1], [0], [0], [1], [0, 0, 1, 1], [], []>} : vector<16x22xf32>, vector<22x32xf32>, vector<16x32xf32> -> vector<16x32xf32>
    %19 = arith.addf %2, %18 : vector<16x32xf32>
    %c0_6 = arith.constant 0 : index
    %c0_7 = arith.constant 0 : index
    %20 = vector.load %arg4[%c0_6, %c0_7] : memref<1x32xf32, #tpu.memory_space<vmem>>, vector<1x32xf32>
    %21 = vector.broadcast %20 : vector<1x32xf32> to vector<16x32xf32>
    %22 = arith.addf %19, %21 : vector<16x32xf32>
    %cst_8 = arith.constant 0.000000e+00 : f32
    %23 = vector.broadcast %cst_8 : f32 to vector<16x32xf32>
    %24 = arith.maximumf %22, %23 : vector<16x32xf32>
    %25 = vector.shape_cast %24 : vector<16x32xf32> to vector<2x8x32xf32>
    %cst_9 = arith.constant dense<0.000000e+00> : vector<2x32xf32>
    %26 = vector.multi_reduction <add>, %25, %cst_9 [1] : vector<2x8x32xf32> to vector<2x32xf32>
    %c0_10 = arith.constant 0 : index
    %c0_11 = arith.constant 0 : index
    %27 = vector.load %arg5[%c0_10, %c0_11] : memref<32x16xf32, #tpu.memory_space<vmem>>, vector<32x16xf32>
    %cst_12 = arith.constant dense<0.000000e+00> : vector<2x16xf32>
    %28 = tpu.matmul %26, %27, %cst_12 {dimension_numbers = #tpu.dot_dimension_numbers<[1], [0], [0], [1], [0, 0, 1, 1], [], []>} : vector<2x32xf32>, vector<32x16xf32>, vector<2x16xf32> -> vector<2x16xf32>
    %c0_13 = arith.constant 0 : index
    %c0_14 = arith.constant 0 : index
    %29 = vector.load %arg6[%c0_13, %c0_14] : memref<1x16xf32, #tpu.memory_space<vmem>>, vector<1x16xf32>
    %30 = vector.broadcast %29 : vector<1x16xf32> to vector<2x16xf32>
    %31 = arith.addf %28, %30 : vector<2x16xf32>
    %c0_15 = arith.constant 0 : index
    %c0_16 = arith.constant 0 : index
    %32 = vector.load %arg7[%c0_15, %c0_16] : memref<2x16xf32, #tpu.memory_space<vmem>>, vector<2x16xf32>
    tpu.vector_store %arg7[%c0_15, %c0_16], %31 {strides = array<i32>} : memref<2x16xf32, #tpu.memory_space<vmem>>, vector<2x16xf32>,
    return
  }
  func.func @transform_0(%arg0: i32) -> (i32, i32) {
    %c0_i32 = arith.constant 0 : i32
    %c0_i32_0 = arith.constant 0 : i32
    return %arg0, %c0_i32 : i32, i32
  }
  func.func @transform_1(%arg0: i32) -> (i32, i32) {
    %c0_i32 = arith.constant 0 : i32
    %c0_i32_0 = arith.constant 0 : i32
    %c0_i32_1 = arith.constant 0 : i32
    return %c0_i32, %c0_i32_0 : i32, i32
  }
  func.func @transform_2(%arg0: i32) -> (i32, i32) {
    %c0_i32 = arith.constant 0 : i32
    %c0_i32_0 = arith.constant 0 : i32
    %c0_i32_1 = arith.constant 0 : i32
    return %c0_i32, %c0_i32_0 : i32, i32
  }
  func.func @transform_3(%arg0: i32) -> (i32, i32) {
    %c0_i32 = arith.constant 0 : i32
    %c0_i32_0 = arith.constant 0 : i32
    %c0_i32_1 = arith.constant 0 : i32
    return %c0_i32, %c0_i32_0 : i32, i32
  }
  func.func @transform_4(%arg0: i32) -> (i32, i32) {
    %c0_i32 = arith.constant 0 : i32
    %c0_i32_0 = arith.constant 0 : i32
    %c0_i32_1 = arith.constant 0 : i32
    return %c0_i32, %c0_i32_0 : i32, i32
  }
  func.func @transform_5(%arg0: i32) -> (i32, i32) {
    %c0_i32 = arith.constant 0 : i32
    %c0_i32_0 = arith.constant 0 : i32
    %c0_i32_1 = arith.constant 0 : i32
    return %c0_i32, %c0_i32_0 : i32, i32
  }
  func.func @transform_6(%arg0: i32) -> (i32, i32) {
    %c0_i32 = arith.constant 0 : i32
    %c0_i32_0 = arith.constant 0 : i32
    return %arg0, %c0_i32 : i32, i32
  }
}

</mosaic_0001>

<llo_original>
// kernel: tpu_custom_call.1
$region0: #{tpu_custom_call.1}
  #allocation0 [shape = 'u32[]', space=smem, size = 0x4, offset = 0x4, fixed_abs, tag = 'smem constant byte address 0x4 - core index']
  #allocation1 [shape = 'u32[72,128]{1,0:T(1,128)}', space=vmem, size = 0x9000, scoped, tag = 'internal scratch']
  %s0 = inlined_call_operand.hbm [shape: f32[16,24], index: 0, kind: input, shape index: {}]
  %s1 = inlined_call_operand.vmem [shape: f32[24,32], index: 1, kind: input, shape index: {}]
  %s2 = inlined_call_operand.vmem [shape: f32[22,32], index: 2, kind: input, shape index: {}]
  %s3 = inlined_call_operand.vmem [shape: f32[1,32], index: 3, kind: input, shape index: {}]
  %s4 = inlined_call_operand.vmem [shape: f32[32,16], index: 4, kind: input, shape index: {}]
  %s5 = inlined_call_operand.vmem [shape: f32[1,16], index: 5, kind: input, shape index: {}]
  %s6 = inlined_call_operand.hbm [shape: f32[2,16], index: 6, kind: output, shape index: {}]
  %s7 = sld [smem:[#allocation0]]
  $region38: #{tpu_custom_call.1} parent=0
    _
  %s9 = ssub.s32 1, %s7
  %s10 = scalar_select 0, %s9, %s7
  $region1: #{tpu_custom_call.1} parent=0
    #allocation2 [shape = 'u8[8192]{0}', space=vmem, size = 0x2000, scoped, tag = 'input window, operand 0, single buffered']
    #allocation3 [shape = 's32[1]{0}', space=sflag, size = 0x4, scoped, tag = 'scoped memory for tpu_custom_call.1']
    #allocation4 [shape = 's32[1]{0}', space=sflag, size = 0x4, scoped, tag = 'scoped memory for tpu_custom_call.1']
    #allocation5 [shape = 'u8[1024]{0}', space=vmem, size = 0x400, scoped, tag = 'output window, operand 0, single buffered']
    %11 = vsyncpa [#allocation3], 0
    %12 = vsyncpa [#allocation4], 0
    // Predicated region
    $region2: #{tpu_custom_call.1} parent=1 // pred_check
      _
    $region3: #{tpu_custom_call.1} parent=1 // pred_check_branch
      %14 = sbr.rel (0) target = $region5
    $region4: #{tpu_custom_call.1} parent=1 // pred_region
      %16 = vsyncadd [#allocation3], 0
      %s17 = sshll.u32 %s0, 4
      %s18 = int_to_ptr.hbm [resolvable:$true] %s17
      %s19 = sshll.u32 [#allocation2], 4
      %s20 = int_to_ptr.vmem [resolvable:$true] %s19
      %25 = dma.hbm_to_vmem [thread:$0]  %s18, 256, %s20, [#allocation3], 128, 128, 8
    $region5: #{tpu_custom_call.1} parent=1 // pred_fallthru
      _
    // Predicated region
    $region6: #{tpu_custom_call.1} parent=1 // pred_check
      _
    $region7: #{tpu_custom_call.1} parent=1 // pred_check_branch
      %27 = sbr.rel (0) target = $region9
    $region8: #{tpu_custom_call.1} parent=1 // pred_region
      _
    $region9: #{tpu_custom_call.1} parent=1 // pred_fallthru
      _
    // Predicated region
    $region10: #{tpu_custom_call.1} parent=1 // pred_check
      _
    $region11: #{tpu_custom_call.1} parent=1 // pred_check_branch
      %29 = sbr.rel (0) target = $region13
    $region12: #{tpu_custom_call.1} parent=1 // pred_region
      _
    $region13: #{tpu_custom_call.1} parent=1 // pred_fallthru
      _
    // Predicated region
    $region14: #{tpu_custom_call.1} parent=1 // pred_check
      _
    $region15: #{tpu_custom_call.1} parent=1 // pred_check_branch
      %31 = sbr.rel (0) target = $region17
    $region16: #{tpu_custom_call.1} parent=1 // pred_region
      _
    $region17: #{tpu_custom_call.1} parent=1 // pred_fallthru
      _
    // Predicated region
    $region18: #{tpu_custom_call.1} parent=1 // pred_check
      _
    $region19: #{tpu_custom_call.1} parent=1 // pred_check_branch
      %33 = sbr.rel (0) target = $region21
    $region20: #{tpu_custom_call.1} parent=1 // pred_region
      _
    $region21: #{tpu_custom_call.1} parent=1 // pred_fallthru
      _
    // Predicated region
    $region22: #{tpu_custom_call.1} parent=1 // pred_check
      _
    $region23: #{tpu_custom_call.1} parent=1 // pred_check_branch
      %35 = sbr.rel (0) target = $region25
    $region24: #{tpu_custom_call.1} parent=1 // pred_region
      _
    $region25: #{tpu_custom_call.1} parent=1 // pred_fallthru
      _
    // Predicated region
    $region26: #{tpu_custom_call.1} parent=1 // pred_check
      _
    $region27: #{tpu_custom_call.1} parent=1 // pred_check_branch
      %37 = sbr.rel (0) target = $region29
    $region28: #{tpu_custom_call.1} parent=1 // pred_region
      %39 = dma.done [#allocation3], 256
    $region29: #{tpu_custom_call.1} parent=1 // pred_fallthru
      _
    %v40 = vld [vmem:[#allocation2] sm:$0xff]
    %v41 = vld [vmem:[#allocation2 + $0x8] sm:$0xff]
    %v42 = vld [vmem:[%s1] sm:$0xff]
    %v43 = vld [vmem:[%s1 + $0x8] sm:$0xff]
    %v44 = vld [vmem:[%s1 + $0x10] sm:$0xff]
    %v45 = vcvt.f32.s32.to.zero.pseudo %v40
    %v46 = vcvt.f32.s32.to.zero.pseudo %v41
    %v47 = vadd.s32 %v45, 10
    %v48 = vadd.s32 %v46, 10
    %v49 = vlaneseq
    %v50 = vand.u32 %v49, 127
    %51 = vset.pattern.permute.xlu0 16
    %52 = vperm.xlu0 %51, %v45
    %v53 = vpop.permute.xlu0 %52
    %54 = vset.pattern.permute.xlu0 16
    %55 = vperm.xlu0 %54, %v46
    %v56 = vpop.permute.xlu0 %55
    %vm57 = vcmp.eq.s32.totalorder %v50, %v53
    %vm58 = vcmp.eq.s32.totalorder %v50, %v56
    %59 = vset.pattern.permute.xlu0 17
    %60 = vperm.xlu0 %59, %v47
    %v61 = vpop.permute.xlu0 %60
    %62 = vset.pattern.permute.xlu0 17
    %63 = vperm.xlu0 %62, %v48
    %v64 = vpop.permute.xlu0 %63
    %vm65 = vcmp.eq.s32.totalorder %v50, %v61
    %vm66 = vcmp.eq.s32.totalorder %v50, %v64
    %vm67 = vmor %vm57, %vm65
    %vm68 = vmor %vm58, %vm66
    %v69 = vsel %vm67, 1, 0
    %v70 = vsel %vm68, 1, 0
    %v71 = vcvt.s32.f32 %v69
    %v72 = vcvt.s32.f32 %v70
    %v73 = vld [vmem:[%s2] sm:$0xff]
    %v74 = vld [vmem:[%s2 + $0x8] sm:$0xff]
    %v75 = vld [vmem:[%s2 + $0x10] sm:$0x3f]
    %vm76 = vcmask 179200
    %v78 = vsel %vm76, %v71, 0
    %v81 = vsel %vm76, %v72, 0
    %vm83 = vcmask 1045504
    %v85 = vsel %vm83, %v75, 0
    %87 = vmatpush.msra.mxu0 0.0
    %88 = vmatpush.msra.mxu0 0.0
    %89 = vmatpush.msra.mxu0 0.0
    %90 = vmatpush.msra.mxu0 0.0
    %91 = vmatpush.msra.mxu0 0.0
    %92 = vmatpush.msra.mxu0 0.0
    %93 = vmatpush.msra.mxu0 0.0
    %94 = vmatpush.msra.mxu0 0.0
    %95 = vmatpush.msra.mxu0 0.0
    %96 = vmatpush.msra.mxu0 0.0
    %97 = vmatpush.msra.mxu0 0.0
    %98 = vmatpush.msra.mxu0 0.0
    %99 = vmatpush.msra.mxu0 0.0
    %100 = vmatpush.msra.mxu0 %v85
    %101 = vmatpush.msra.mxu0 %v74
    %102 = vmatpush.msra.mxu0 %v73
    %103 = vmatmul.f32.gmra.mxu0 %v78
    %v104 = vpop.f32.mrf.mxu0
    %v105 = vadd.f32 0.0, %v104
    %106 = vmatmul.f32.gmra.mxu0 %v81
    %v107 = vpop.f32.mrf.mxu0
    %v108 = vadd.f32 0.0, %v107
    %109 = vdwg.mxu0
    %vm110 = vcmask 195584
    %v112 = vsel %vm110, %v40, 0
    %v115 = vsel %vm110, %v41, 0
    %117 = vmatpush.msra.mxu0 0.0
    %118 = vmatpush.msra.mxu0 0.0
    %119 = vmatpush.msra.mxu0 0.0
    %120 = vmatpush.msra.mxu0 0.0
    %121 = vmatpush.msra.mxu0 0.0
    %122 = vmatpush.msra.mxu0 0.0
    %123 = vmatpush.msra.mxu0 0.0
    %124 = vmatpush.msra.mxu0 0.0
    %125 = vmatpush.msra.mxu0 0.0
    %126 = vmatpush.msra.mxu0 0.0
    %127 = vmatpush.msra.mxu0 0.0
    %128 = vmatpush.msra.mxu0 0.0
    %129 = vmatpush.msra.mxu0 0.0
    %130 = vmatpush.msra.mxu0 %v44
    %131 = vmatpush.msra.mxu0 %v43
    %132 = vmatpush.msra.mxu0 %v42
    %133 = vmatmul.f32.gmra.mxu0 %v112
    %v134 = vpop.f32.mrf.mxu0
    %v135 = vadd.f32 %v105, %v134
    %136 = vmatmul.f32.gmra.mxu0 %v115
    %v137 = vpop.f32.mrf.mxu0
    %v138 = vadd.f32 %v108, %v137
    %139 = vdwg.mxu0
    %v140 = vld [vmem:[%s3] sm:$0x1]
    %v142 = vperm.slane %v140, 0
    %v144 = vadd.f32 %v135, %v142
    %v145 = vadd.f32 %v138, %v142
    %v146 = vmax.f32 %v144, 0.0
    %v147 = vmax.f32 %v145, 0.0
    %vm148 = vcmask 261120
    %v149 = vsel %vm148, %v146, 0.0
    %v150 = vrot.slane %v149, 4
    %v151 = vadd.f32 %v149, %v150
    %v152 = vrot.slane %v151, 2
    %v153 = vadd.f32 %v151, %v152
    %v154 = vrot.slane %v153, 1
    %v155 = vadd.f32 %v153, %v154
    %v156 = vsel %vm148, %v147, 0.0
    %v157 = vrot.slane %v156, 4
    %v158 = vadd.f32 %v156, %v157
    %v159 = vrot.slane %v158, 2
    %v160 = vadd.f32 %v158, %v159
    %v161 = vrot.slane %v160, 1
    %v162 = vadd.f32 %v160, %v161
    %v163 = vld [vmem:[%s4] sm:$0xff]
    %v164 = vld [vmem:[%s4 + $0x8] sm:$0xff]
    %v165 = vld [vmem:[%s4 + $0x10] sm:$0xff]
    %v166 = vld [vmem:[%s4 + $0x18] sm:$0xff]
    %v167 = vld [vmem:[%s5] sm:$0x1]
    %v169 = vperm.slane %v167, 0
    %vm173 = vcmask 1041409
    %v174 = vsel %vm173, %v162, %v155
    %v175 = vsel %vm148, %v174, 0
    %177 = vmatpush.msra.mxu0 0.0
    %178 = vmatpush.msra.mxu0 0.0
    %179 = vmatpush.msra.mxu0 0.0
    %180 = vmatpush.msra.mxu0 0.0
    %181 = vmatpush.msra.mxu0 0.0
    %182 = vmatpush.msra.mxu0 0.0
    %183 = vmatpush.msra.mxu0 0.0
    %184 = vmatpush.msra.mxu0 0.0
    %185 = vmatpush.msra.mxu0 0.0
    %186 = vmatpush.msra.mxu0 0.0
    %187 = vmatpush.msra.mxu0 0.0
    %188 = vmatpush.msra.mxu0 0.0
    %189 = vmatpush.msra.mxu0 %v166
    %190 = vmatpush.msra.mxu0 %v165
    %191 = vmatpush.msra.mxu0 %v164
    %192 = vmatpush.msra.mxu0 %v163
    %193 = vmatmul.f32.gmra.mxu0 %v175
    %v194 = vpop.f32.mrf.mxu0
    %v195 = vadd.f32 %v169, %v194
    %196 = vdwg.mxu0
    %vm197 = vcmask 123904
    %198 = vst.msk [vmem:[#allocation5] sm:$0x3] %vm197, %v195
    // Predicated region
    $region30: #{tpu_custom_call.1} parent=1 // pred_check
      _
    $region31: #{tpu_custom_call.1} parent=1 // pred_check_branch
      %200 = sbr.rel (0) target = $region33
    $region32: #{tpu_custom_call.1} parent=1 // pred_region
      %202 = vsyncadd [#allocation4], 0
      %s204 = sshll.u32 [#allocation5], 4
      %s205 = int_to_ptr.vmem [resolvable:$true] %s204
      %s206 = sshll.u32 %s6, 4
      %s207 = int_to_ptr.hbm [resolvable:$true] %s206
      %209 = dma.vmem_to_hbm [thread:$0]  %s205, 32, %s207, [#allocation4]
    $region33: #{tpu_custom_call.1} parent=1 // pred_fallthru
      _
    // Predicated region
    $region34: #{tpu_custom_call.1} parent=1 // pred_check
      _
    $region35: #{tpu_custom_call.1} parent=1 // pred_check_branch
      %211 = sbr.rel (0) target = $region37
    $region36: #{tpu_custom_call.1} parent=1 // pred_region
      %213 = dma.done [#allocation4], 32
    $region37: #{tpu_custom_call.1} parent=1 // pred_fallthru
      _
    %214 = vsyncpa [#allocation3], 1
    %215 = vsyncpa [#allocation4], 1

</llo_original>
